<compile_context>
chip_gen: v5e
topology: v5e:2x2
jax: 0.10.0
libtpu: 0.0.40
codegen_flags: <defaults>
</compile_context>

<pallas_src>
import functools

import jax
import jax.numpy as jnp
from jax.experimental import pallas as pl
from jax.experimental.pallas import tpu as pltpu

LANE = 128      # TPU lane width
SUB = 8         # f32 sublane count
TB_CAP = 1024   # max rows per batch tile (x+out ~1 MiB per buffer at cap)
NEG_BIG = -1e30


def _round_up(v, m):
    return (v + m - 1) // m * m


def actor_kernel(x_ref, w_ref, b_ref, out_ref, *, k_in):
    x = x_ref[...]                       # (TB, K_pad) -- real features only

    w1 = w_ref[0, :k_in, :]              # static sublane-aligned slice (K_pad,128)
    w2 = w_ref[1]                        # (128, 128), zero-padded
    w3 = w_ref[2]
    b1 = b_ref[0:1, :]                   # (1, 128)
    b2 = b_ref[1:2, :]
    b3 = b_ref[2:3, :]                   # padded lanes hold -1e30 -> softmax mask

    # fc1 + ReLU (zero-padded weight rows/cols contribute nothing)
    h1 = jnp.maximum(jnp.dot(x, w1, preferred_element_type=jnp.float32) + b1, 0.0)
    # fc2 + ReLU
    h2 = jnp.maximum(jnp.dot(h1, w2, preferred_element_type=jnp.float32) + b2, 0.0)
    # action_head; padded output lanes become -1e30 via the bias add
    logits = jnp.dot(h2, w3, preferred_element_type=jnp.float32) + b3

    # softmax over lanes: padded lanes underflow to exactly 0.
    m = jnp.max(logits, axis=-1, keepdims=True)
    e = jnp.exp(logits - m)
    denom = jnp.sum(e, axis=-1, keepdims=True)
    out_ref[...] = e * pl.reciprocal(denom, approx=False)


def _tile_batch(B):
    """Pick (B_pad, TB): sublane-aligned; >=2 grid steps for big batches."""
    B_pad = _round_up(max(B, SUB), SUB)
    if B_pad <= 2 * LANE:                      # small batch: single tile/step
        return B_pad, B_pad
    n_tiles = max(2, pl.cdiv(B_pad, TB_CAP))   # >=2 so both v7x TCs get work
    TB = min(_round_up(pl.cdiv(B_pad, n_tiles), LANE), TB_CAP)
    B_pad = _round_up(B_pad, TB)
    return B_pad, TB


@functools.partial(jax.jit, static_argnames=("num_output",))
def actor_forward(x, w_slab, b_slab, num_output):
    """x: (B, num_input) f32; w_slab: (3,128,128); b_slab: (3,128)."""
    B, num_input = x.shape
    assert num_input <= LANE and num_output <= LANE, "dims must be <= 128"

    K_pad = _round_up(num_input, SUB)          # feature pad to sublane multiple
    B_pad, TB = _tile_batch(B)

    if (B_pad, K_pad) != (B, num_input):
        x_in = jnp.zeros((B_pad, K_pad), jnp.float32).at[:B, :num_input].set(x)
    else:
        x_in = x

    out_pad = pl.pallas_call(
        functools.partial(actor_kernel, k_in=K_pad),
        out_shape=jax.ShapeDtypeStruct((B_pad, LANE), jnp.float32),
        grid=(B_pad // TB,),
        in_specs=[
            pl.BlockSpec((TB, K_pad), lambda i: (i, 0)),          # x tile
            pl.BlockSpec(w_slab.shape, lambda i: (0, 0, 0)),      # weights resident
            pl.BlockSpec(b_slab.shape, lambda i: (0, 0)),         # biases resident
        ],
        out_specs=pl.BlockSpec((TB, LANE), lambda i: (i, 0)),
        compiler_params=pltpu.CompilerParams(
            dimension_semantics=("parallel",)),                   # batch across TCs
    )(x_in, w_slab, b_slab)

    return out_pad[:B, :num_output]


def init_actor_params(key, num_input, num_output, node_num):
    """Deterministic init mimicking nn.Linear's uniform(-1/sqrt(fan_in), ...).
    Weights stored as (in_features, out_features)."""
    ks = jax.random.split(key, 6)

    def linear(kw, kb, fan_in, fan_out):
        bound = 1.0 / jnp.sqrt(fan_in)
        w = jax.random.uniform(kw, (fan_in, fan_out), jnp.float32, -bound, bound)
        b = jax.random.uniform(kb, (1, fan_out), jnp.float32, -bound, bound)
        return w, b

    w1, b1 = linear(ks[0], ks[1], num_input, node_num)
    w2, b2 = linear(ks[2], ks[3], node_num, node_num)
    w3, b3 = linear(ks[4], ks[5], node_num, num_output)
    return (w1, b1, w2, b2, w3, b3)


def pack_params(params, num_input, num_output, node_num):
    """Pack 6 parameter tensors into one zero-padded weight slab and one bias
    slab (2 parameter DMAs). The action_head bias row carries -1e30 in padded
    lanes so the kernel's softmax mask comes for free."""
    assert max(num_input, num_output, node_num) <= LANE, "dims must be <= 128"
    w1, b1, w2, b2, w3, b3 = params

    w_slab = jnp.zeros((3, LANE, LANE), jnp.float32)
    w_slab = w_slab.at[0, :num_input, :node_num].set(w1)
    w_slab = w_slab.at[1, :node_num, :node_num].set(w2)
    w_slab = w_slab.at[2, :node_num, :num_output].set(w3)

    b_slab = jnp.zeros((3, LANE), jnp.float32)
    b_slab = b_slab.at[0, :node_num].set(b1.reshape(-1))
    b_slab = b_slab.at[1, :node_num].set(b2.reshape(-1))
    b_slab = b_slab.at[2, :num_output].set(b3.reshape(-1))
    b_slab = b_slab.at[2, num_output:].set(NEG_BIG)   # baked-in softmax mask
    return w_slab, b_slab


def _ref_forward(x, params):
    w1, b1, w2, b2, w3, b3 = params
    h1 = jnp.maximum(x @ w1 + b1, 0.0)
    h2 = jnp.maximum(h1 @ w2 + b2, 0.0)
    return jax.nn.softmax(h2 @ w3 + b3, axis=1)


if __name__ == "__main__":
    num_input, num_output, node_num = 8, 6, 32

    key = jax.random.PRNGKey(0)
    k_x, k_p, k_x2 = jax.random.split(key, 3)
    params = init_actor_params(k_p, num_input, num_output, node_num)
    w_slab, b_slab = pack_params(params, num_input, num_output, node_num)

    # Small batch (single tile / single grid step)
    x_small = jax.random.normal(k_x, (4, num_input), dtype=jnp.float32)
    out_small = jax.block_until_ready(actor_forward(x_small, w_slab, b_slab, num_output))
    ref_small = _ref_forward(x_small, params)
    assert jnp.allclose(out_small, ref_small, atol=1e-5, rtol=1e-5)
    assert jnp.allclose(jnp.sum(out_small, axis=1), 1.0, atol=1e-5)

    # Larger batch (exercises the multi-tile, 2-step "parallel" grid path)
    x_big = jax.random.normal(k_x2, (300, num_input), dtype=jnp.float32)
    out_big = jax.block_until_ready(actor_forward(x_big, w_slab, b_slab, num_output))
    ref_big = _ref_forward(x_big, params)
    assert jnp.allclose(out_big, ref_big, atol=1e-5, rtol=1e-5)
    assert jnp.allclose(jnp.sum(out_big, axis=1), 1.0, atol=1e-5)

    print("KERNEL_OK")
</pallas_src>

<mosaic_0001>
module attributes {stable_mosaic.version = 11 : i64} {
  func.func @actor_kernel(%arg0: i32, %arg1: memref<8x8xf32, #tpu.memory_space<vmem>>, %arg2: memref<3x128x128xf32, #tpu.memory_space<vmem>>, %arg3: memref<3x128xf32, #tpu.memory_space<vmem>>, %arg4: memref<8x128xf32, #tpu.memory_space<vmem>>) attributes {dimension_semantics = [#tpu.dimension_semantics<parallel>], iteration_bounds = array<i64: 1>, scalar_prefetch = 0 : i64, scratch_operands = 0 : i64, tpu.core_type = #tpu.core_type<tc>, window_params = [{transform_indices = @transform_0, window_bounds = array<i64: 8, 8>}, {pipeline_mode = #tpu.pipeline_mode<synchronous>, transform_indices = @transform_1, window_bounds = array<i64: 3, 128, 128>}, {pipeline_mode = #tpu.pipeline_mode<synchronous>, transform_indices = @transform_2, window_bounds = array<i64: 3, 128>}, {transform_indices = @transform_3, window_bounds = array<i64: 8, 128>}]} {
    %c0 = arith.constant 0 : index
    %c0_0 = arith.constant 0 : index
    %0 = vector.load %arg1[%c0, %c0_0] : memref<8x8xf32, #tpu.memory_space<vmem>>, vector<8x8xf32>
    %c0_1 = arith.constant 0 : index
    %c0_2 = arith.constant 0 : index
    %c0_3 = arith.constant 0 : index
    %1 = vector.load %arg2[%c0_1, %c0_2, %c0_3] : memref<3x128x128xf32, #tpu.memory_space<vmem>>, vector<1x8x128xf32>
    %2 = vector.shape_cast %1 : vector<1x8x128xf32> to vector<8x128xf32>
    %c1 = arith.constant 1 : index
    %c0_4 = arith.constant 0 : index
    %c0_5 = arith.constant 0 : index
    %3 = vector.load %arg2[%c1, %c0_4, %c0_5] : memref<3x128x128xf32, #tpu.memory_space<vmem>>, vector<1x128x128xf32>
    %4 = vector.shape_cast %3 : vector<1x128x128xf32> to vector<128x128xf32>
    %c2 = arith.constant 2 : index
    %c0_6 = arith.constant 0 : index
    %c0_7 = arith.constant 0 : index
    %5 = vector.load %arg2[%c2, %c0_6, %c0_7] : memref<3x128x128xf32, #tpu.memory_space<vmem>>, vector<1x128x128xf32>
    %6 = vector.shape_cast %5 : vector<1x128x128xf32> to vector<128x128xf32>
    %c0_8 = arith.constant 0 : index
    %c0_9 = arith.constant 0 : index
    %7 = vector.load %arg3[%c0_8, %c0_9] : memref<3x128xf32, #tpu.memory_space<vmem>>, vector<1x128xf32>
    %c1_10 = arith.constant 1 : index
    %c0_11 = arith.constant 0 : index
    %8 = vector.load %arg3[%c1_10, %c0_11] : memref<3x128xf32, #tpu.memory_space<vmem>>, vector<1x128xf32>
    %c2_12 = arith.constant 2 : index
    %c0_13 = arith.constant 0 : index
    %9 = vector.load %arg3[%c2_12, %c0_13] : memref<3x128xf32, #tpu.memory_space<vmem>>, vector<1x128xf32>
    %cst = arith.constant dense<0.000000e+00> : vector<8x128xf32>
    %10 = tpu.matmul %0, %2, %cst {dimension_numbers = #tpu.dot_dimension_numbers<[1], [0], [0], [1], [0, 0, 1, 1], [], []>} : vector<8x8xf32>, vector<8x128xf32>, vector<8x128xf32> -> vector<8x128xf32>
    %11 = vector.broadcast %7 : vector<1x128xf32> to vector<8x128xf32>
    %12 = arith.addf %10, %11 : vector<8x128xf32>
    %cst_14 = arith.constant 0.000000e+00 : f32
    %13 = vector.broadcast %cst_14 : f32 to vector<8x128xf32>
    %14 = arith.maximumf %12, %13 : vector<8x128xf32>
    %cst_15 = arith.constant dense<0.000000e+00> : vector<8x128xf32>
    %15 = tpu.matmul %14, %4, %cst_15 {dimension_numbers = #tpu.dot_dimension_numbers<[1], [0], [0], [1], [0, 0, 1, 1], [], []>} : vector<8x128xf32>, vector<128x128xf32>, vector<8x128xf32> -> vector<8x128xf32>
    %16 = vector.broadcast %8 : vector<1x128xf32> to vector<8x128xf32>
    %17 = arith.addf %15, %16 : vector<8x128xf32>
    %cst_16 = arith.constant 0.000000e+00 : f32
    %18 = vector.broadcast %cst_16 : f32 to vector<8x128xf32>
    %19 = arith.maximumf %17, %18 : vector<8x128xf32>
    %cst_17 = arith.constant dense<0.000000e+00> : vector<8x128xf32>
    %20 = tpu.matmul %19, %6, %cst_17 {dimension_numbers = #tpu.dot_dimension_numbers<[1], [0], [0], [1], [0, 0, 1, 1], [], []>} : vector<8x128xf32>, vector<128x128xf32>, vector<8x128xf32> -> vector<8x128xf32>
    %21 = vector.broadcast %9 : vector<1x128xf32> to vector<8x128xf32>
    %22 = arith.addf %20, %21 : vector<8x128xf32>
    %cst_18 = arith.constant dense<0xFF800000> : vector<8xf32>
    %23 = vector.multi_reduction <maximumf>, %22, %cst_18 [1] : vector<8x128xf32> to vector<8xf32>
    %24 = vector.shape_cast %23 : vector<8xf32> to vector<8x1xf32>
    %25 = vector.broadcast %24 : vector<8x1xf32> to vector<8x128xf32>
    %26 = arith.subf %22, %25 : vector<8x128xf32>
    %27 = math.exp %26 : vector<8x128xf32>
    %cst_19 = arith.constant dense<0.000000e+00> : vector<8xf32>
    %28 = vector.multi_reduction <add>, %27, %cst_19 [1] : vector<8x128xf32> to vector<8xf32>
    %29 = vector.shape_cast %28 : vector<8xf32> to vector<8x1xf32>
    %30 = tpu.reciprocal %29 : vector<8x1xf32> -> vector<8x1xf32>
    %31 = vector.broadcast %30 : vector<8x1xf32> to vector<8x128xf32>
    %32 = arith.mulf %27, %31 : vector<8x128xf32>
    %c0_20 = arith.constant 0 : index
    %c0_21 = arith.constant 0 : index
    %33 = vector.load %arg4[%c0_20, %c0_21] : memref<8x128xf32, #tpu.memory_space<vmem>>, vector<8x128xf32>
    tpu.vector_store %arg4[%c0_20, %c0_21], %32 {strides = array<i32>} : memref<8x128xf32, #tpu.memory_space<vmem>>, vector<8x128xf32>,
    return
  }
  func.func @transform_0(%arg0: i32) -> (i32, i32) {
    %c0_i32 = arith.constant 0 : i32
    %c0_i32_0 = arith.constant 0 : i32
    return %arg0, %c0_i32 : i32, i32
  }
  func.func @transform_1(%arg0: i32) -> (i32, i32, i32) {
    %c0_i32 = arith.constant 0 : i32
    %c0_i32_0 = arith.constant 0 : i32
    %c0_i32_1 = arith.constant 0 : i32
    %c0_i32_2 = arith.constant 0 : i32
    return %c0_i32, %c0_i32_0, %c0_i32_1 : i32, i32, i32
  }
  func.func @transform_2(%arg0: i32) -> (i32, i32) {
    %c0_i32 = arith.constant 0 : i32
    %c0_i32_0 = arith.constant 0 : i32
    %c0_i32_1 = arith.constant 0 : i32
    return %c0_i32, %c0_i32_0 : i32, i32
  }
  func.func @transform_3(%arg0: i32) -> (i32, i32) {
    %c0_i32 = arith.constant 0 : i32
    %c0_i32_0 = arith.constant 0 : i32
    return %arg0, %c0_i32 : i32, i32
  }
}

</mosaic_0001>

<llo_original>
// kernel: actor_forward.1
$region0: #{actor_forward.1}
  #allocation0 [shape = 'u32[]', space=smem, size = 0x4, offset = 0x4, fixed_abs, tag = 'smem constant byte address 0x4 - core index']
  #allocation1 [shape = 'u32[72,128]{1,0:T(1,128)}', space=vmem, size = 0x9000, scoped, tag = 'internal scratch']
  %s0 = inlined_call_operand.vmem [shape: f32[8,8], index: 0, kind: input, shape index: {}]
  %s1 = inlined_call_operand.hbm [shape: f32[3,128,128], index: 1, kind: input, shape index: {}]
  %s2 = inlined_call_operand.vmem [shape: f32[3,128], index: 2, kind: input, shape index: {}]
  %s3 = inlined_call_operand.vmem [shape: f32[8,128], index: 3, kind: output, shape index: {}]
  %s4 = sld [smem:[#allocation0]]
  $region26: #{actor_forward.1} parent=0
    _
  %s6 = ssub.s32 1, %s4
  %s7 = scalar_select 0, %s6, %s4
  $region1: #{actor_forward.1} parent=0
    #allocation2 [shape = 'u8[196608]{0}', space=vmem, size = 0x30000, scoped, tag = 'input window, operand 1, single buffered']
    #allocation3 [shape = 's32[1]{0}', space=sflag, size = 0x4, scoped, tag = 'scoped memory for actor_forward.1']
    %8 = vsyncpa [#allocation3], 0
    // Predicated region
    $region2: #{actor_forward.1} parent=1 // pred_check
      _
    $region3: #{actor_forward.1} parent=1 // pred_check_branch
      %10 = sbr.rel (0) target = $region5
    $region4: #{actor_forward.1} parent=1 // pred_region
      _
    $region5: #{actor_forward.1} parent=1 // pred_fallthru
      _
    // Predicated region
    $region6: #{actor_forward.1} parent=1 // pred_check
      _
    $region7: #{actor_forward.1} parent=1 // pred_check_branch
      %12 = sbr.rel (0) target = $region9
    $region8: #{actor_forward.1} parent=1 // pred_region
      %14 = vsyncadd [#allocation3], 0
      %s15 = sshll.u32 %s1, 4
      %s16 = int_to_ptr.hbm [resolvable:$true] %s15
      %s17 = sshll.u32 [#allocation2], 4
      %s18 = int_to_ptr.vmem [resolvable:$true] %s17
      %23 = dma.hbm_to_vmem [thread:$0]  %s16, 6144, %s18, [#allocation3], 128, 128, 8
    $region9: #{actor_forward.1} parent=1 // pred_fallthru
      _
    // Predicated region
    $region10: #{actor_forward.1} parent=1 // pred_check
      _
    $region11: #{actor_forward.1} parent=1 // pred_check_branch
      %25 = sbr.rel (0) target = $region13
    $region12: #{actor_forward.1} parent=1 // pred_region
      _
    $region13: #{actor_forward.1} parent=1 // pred_fallthru
      _
    // Predicated region
    $region14: #{actor_forward.1} parent=1 // pred_check
      _
    $region15: #{actor_forward.1} parent=1 // pred_check_branch
      %27 = sbr.rel (0) target = $region17
    $region16: #{actor_forward.1} parent=1 // pred_region
      %29 = dma.done [#allocation3], 6144
    $region17: #{actor_forward.1} parent=1 // pred_fallthru
      _
    %v30 = vld [vmem:[%s0] sm:$0xff]
    %v31 = vld [vmem:[#allocation2] sm:$0xff]
    %s32 = scalar_lea.vmem [#allocation2], 128
    %v33 = vld [vmem:[%s32] sm:$0xff]
    %v34 = vld [vmem:[%s32 + $0x8] sm:$0xff]
    %v35 = vld [vmem:[%s32 + $0x10] sm:$0xff]
    %v36 = vld [vmem:[%s32 + $0x18] sm:$0xff]
    %v37 = vld [vmem:[%s32 + $0x20] sm:$0xff]
    %v38 = vld [vmem:[%s32 + $0x28] sm:$0xff]
    %v39 = vld [vmem:[%s32 + $0x30] sm:$0xff]
    %v40 = vld [vmem:[%s32 + $0x38] sm:$0xff]
    %v41 = vld [vmem:[%s32 + $0x40] sm:$0xff]
    %v42 = vld [vmem:[%s32 + $0x48] sm:$0xff]
    %v43 = vld [vmem:[%s32 + $0x50] sm:$0xff]
    %v44 = vld [vmem:[%s32 + $0x58] sm:$0xff]
    %v45 = vld [vmem:[%s32 + $0x60] sm:$0xff]
    %v46 = vld [vmem:[%s32 + $0x68] sm:$0xff]
    %v47 = vld [vmem:[%s32 + $0x70] sm:$0xff]
    %v48 = vld [vmem:[%s32 + $0x78] sm:$0xff]
    %s49 = scalar_lea.vmem [#allocation2], 256
    %v50 = vld [vmem:[%s49] sm:$0xff]
    %v51 = vld [vmem:[%s49 + $0x8] sm:$0xff]
    %v52 = vld [vmem:[%s49 + $0x10] sm:$0xff]
    %v53 = vld [vmem:[%s49 + $0x18] sm:$0xff]
    %v54 = vld [vmem:[%s49 + $0x20] sm:$0xff]
    %v55 = vld [vmem:[%s49 + $0x28] sm:$0xff]
    %v56 = vld [vmem:[%s49 + $0x30] sm:$0xff]
    %v57 = vld [vmem:[%s49 + $0x38] sm:$0xff]
    %v58 = vld [vmem:[%s49 + $0x40] sm:$0xff]
    %v59 = vld [vmem:[%s49 + $0x48] sm:$0xff]
    %v60 = vld [vmem:[%s49 + $0x50] sm:$0xff]
    %v61 = vld [vmem:[%s49 + $0x58] sm:$0xff]
    %v62 = vld [vmem:[%s49 + $0x60] sm:$0xff]
    %v63 = vld [vmem:[%s49 + $0x68] sm:$0xff]
    %v64 = vld [vmem:[%s49 + $0x70] sm:$0xff]
    %v65 = vld [vmem:[%s49 + $0x78] sm:$0xff]
    %v66 = vld [vmem:[%s2] sm:$0x1]
    %v67 = vld [vmem:[%s2 + $0x1] sm:$0x1]
    %v68 = vld [vmem:[%s2 + $0x2] sm:$0x1]
    %v69 = vperm.slane %v66, 0
    %vm70 = vcmask 64512
    %v72 = vsel %vm70, %v30, 0
    %74 = vmatpush.msra.mxu0 0.0
    %75 = vmatpush.msra.mxu0 0.0
    %76 = vmatpush.msra.mxu0 0.0
    %77 = vmatpush.msra.mxu0 0.0
    %78 = vmatpush.msra.mxu0 0.0
    %79 = vmatpush.msra.mxu0 0.0
    %80 = vmatpush.msra.mxu0 0.0
    %81 = vmatpush.msra.mxu0 0.0
    %82 = vmatpush.msra.mxu0 0.0
    %83 = vmatpush.msra.mxu0 0.0
    %84 = vmatpush.msra.mxu0 0.0
    %85 = vmatpush.msra.mxu0 0.0
    %86 = vmatpush.msra.mxu0 0.0
    %87 = vmatpush.msra.mxu0 0.0
    %88 = vmatpush.msra.mxu0 0.0
    %89 = vmatpush.msra.mxu0 %v31
    %90 = vmatmul.f32.gmra.mxu0 %v72
    %v91 = vpop.f32.mrf.mxu0
    %v92 = vadd.f32 %v69, %v91
    %93 = vdwg.mxu0
    %v94 = vmax.f32 %v92, 0.0
    %v95 = vperm.slane %v67, 0
    %96 = vmatpush.msra.mxu0 %v48
    %97 = vmatpush.msra.mxu0 %v47
    %98 = vmatpush.msra.mxu0 %v46
    %99 = vmatpush.msra.mxu0 %v45
    %100 = vmatpush.msra.mxu0 %v44
    %101 = vmatpush.msra.mxu0 %v43
    %102 = vmatpush.msra.mxu0 %v42
    %103 = vmatpush.msra.mxu0 %v41
    %104 = vmatpush.msra.mxu0 %v40
    %105 = vmatpush.msra.mxu0 %v39
    %106 = vmatpush.msra.mxu0 %v38
    %107 = vmatpush.msra.mxu0 %v37
    %108 = vmatpush.msra.mxu0 %v36
    %109 = vmatpush.msra.mxu0 %v35
    %110 = vmatpush.msra.mxu0 %v34
    %111 = vmatpush.msra.mxu0 %v33
    %112 = vmatmul.f32.gmra.mxu0 %v94
    %v113 = vpop.f32.mrf.mxu0
    %v114 = vadd.f32 %v95, %v113
    %115 = vdwg.mxu0
    %v116 = vmax.f32 %v114, 0.0
    %v117 = vperm.slane %v68, 0
    %118 = vmatpush.msra.mxu0 %v65
    %119 = vmatpush.msra.mxu0 %v64
    %120 = vmatpush.msra.mxu0 %v63
    %121 = vmatpush.msra.mxu0 %v62
    %122 = vmatpush.msra.mxu0 %v61
    %123 = vmatpush.msra.mxu0 %v60
    %124 = vmatpush.msra.mxu0 %v59
    %125 = vmatpush.msra.mxu0 %v58
    %126 = vmatpush.msra.mxu0 %v57
    %127 = vmatpush.msra.mxu0 %v56
    %128 = vmatpush.msra.mxu0 %v55
    %129 = vmatpush.msra.mxu0 %v54
    %130 = vmatpush.msra.mxu0 %v53
    %131 = vmatpush.msra.mxu0 %v52
    %132 = vmatpush.msra.mxu0 %v51
    %133 = vmatpush.msra.mxu0 %v50
    %134 = vmatmul.f32.gmra.mxu0 %v116
    %v135 = vpop.f32.mrf.mxu0
    %v136 = vadd.f32 %v117, %v135
    %137 = vdwg.mxu0
    %138 = vmax.xlane.f32.xlu0 %v136
    %v139 = vpop.xlane.xlu0 %138
    %v140 = vsub.f32 %v136, %v139
    %v141 = vmul.f32 %v140, 1.442695
    %v142 = vpow.pop %v141
    %143 = vadd.xlane.f32.xlu0 %v142
    %v144 = vpop.xlane.xlu0 %143
    %v145 = vrcp.pop %v144
    %v146 = vmul.f32 %v144, %v145
    %v147 = vsub.f32 1.0, %v146
    %v148 = vmul.f32 %v145, %v147
    %v149 = vadd.f32 %v145, %v148
    %vm150 = vweird.f32 %v144
    %vm151 = vweird.f32 %v145
    %vm152 = vmor %vm150, %vm151
    %v153 = vsel %vm152, %v145, %v149
    %v154 = vand.u32 2147483647, %v144
    %vm155 = vcmp.eq.f32.partialorder %v154, 8.507059e+37
    %v156 = vand.u32 %v144, 2147483648
    %v157 = vor.u32 1.1754944e-38, %v156
    %v158 = vsel %vm155, %v157, %v153
    %v159 = vmul.f32 %v142, %v158
    %160 = vst [vmem:[%s3] sm:$0xff] %v159
    // Predicated region
    $region18: #{actor_forward.1} parent=1 // pred_check
      _
    $region19: #{actor_forward.1} parent=1 // pred_check_branch
      %162 = sbr.rel (0) target = $region21
    $region20: #{actor_forward.1} parent=1 // pred_region
      _
    $region21: #{actor_forward.1} parent=1 // pred_fallthru
      _
    // Predicated region
    $region22: #{actor_forward.1} parent=1 // pred_check
      _
    $region23: #{actor_forward.1} parent=1 // pred_check_branch
      %164 = sbr.rel (0) target = $region25
    $region24: #{actor_forward.1} parent=1 // pred_region
      _
    $region25: #{actor_forward.1} parent=1 // pred_fallthru
      _
    %165 = vsyncpa [#allocation3], 1

</llo_original>
